<compile_context>
chip_gen: v6e
topology: v6e:2x2x1
jax: 0.10.0
libtpu: 0.0.40
codegen_flags: <defaults>
</compile_context>

<pallas_src>
import functools

import jax
import jax.numpy as jnp
from jax.experimental import pallas as pl
from jax.experimental.pallas import tpu as pltpu


def _round_up(x, m):
    return ((x + m - 1) // m) * m


def _mlp_kernel(x_ref, w1_ref, b1_ref, w2_ref, b2_ref, o_ref):
    # Cast x f32 -> bf16 in-kernel (VPU has slack under the MXU); avoids a
    # wrapper-side cast + extra HBM round trip for the activations.
    x = x_ref[...].astype(jnp.bfloat16)
    # Hidden layer: relu(x @ W1 + b1) -- bf16 operands, f32 MXU accumulate.
    h = jnp.dot(x, w1_ref[...], preferred_element_type=jnp.float32)
    h = jnp.maximum(h + b1_ref[...], 0.0)          # f32 epilogue (v5e-friendly)
    # Output layer: relu(h @ W2 + b2) -- bf16 into the MXU, f32 accumulate.
    o = jnp.dot(h.astype(jnp.bfloat16), w2_ref[...],
                preferred_element_type=jnp.float32)
    o = jnp.maximum(o + b2_ref[...], 0.0)
    o_ref[...] = o.astype(o_ref.dtype)


def prepare_mlp_params(w1, b1, w2, b2):
    """One-time weight packing: zero-pad to lane-dense sizes and cast to bf16.

    w1: (Dx*Dy, H), w2: (H, 10) -- PyTorch Linear weights pre-transposed to
    (in, out).  Call once at init; reuse the returned arrays for every forward.
    """
    d_in, hidden = w1.shape
    d_out = w2.shape[1]
    din_p = _round_up(d_in, 128)
    h_p = _round_up(hidden, 128)
    dout_p = _round_up(d_out, 128)

    w1p = jnp.pad(w1, ((0, din_p - d_in), (0, h_p - hidden))).astype(jnp.bfloat16)
    b1p = jnp.pad(b1, (0, h_p - hidden)).reshape(1, h_p).astype(jnp.float32)
    w2p = jnp.pad(w2, ((0, h_p - hidden), (0, dout_p - d_out))).astype(jnp.bfloat16)
    b2p = jnp.pad(b2, (0, dout_p - d_out)).reshape(1, dout_p).astype(jnp.float32)

    packed = jax.block_until_ready((w1p, b1p, w2p, b2p))
    return packed, (d_in, d_out)


def _choose_tm(B, cap=512):
    """Batch tile: sublane-aligned (f32 x => multiple of 8), capped at `cap`,
    minimal tail padding, and >=2 grid steps when B exceeds one minimal tile
    so v7x can shard batch tiles across both TensorCores."""
    b8 = _round_up(max(B, 1), 8)
    if b8 <= 8:
        return 8
    nsteps = max(2, pl.cdiv(b8, cap))
    return _round_up(pl.cdiv(b8, nsteps), 8)


@functools.partial(jax.jit, static_argnames=("d_in", "d_out", "tm"))
def mlp_forward(x_img, w1p, b1p, w2p, b2p, *, d_in, d_out, tm=None):
    """x_img: (B, 1, Dx, Dy) float32 (NCHW). w1p/b1p/w2p/b2p: padded bf16/f32
    params from prepare_mlp_params().  Returns (B, d_out) float32."""
    B = x_img.shape[0]
    din_p, h_p = w1p.shape
    dout_p = w2p.shape[1]

    # x.view(-1, Dx*Dy): free reshape; keep f32 (cast happens in-kernel).
    x = x_img.reshape(B, d_in)
    if din_p != d_in:
        x = jnp.pad(x, ((0, 0), (0, din_p - d_in)))

    if tm is None:
        tm = _choose_tm(B)
    b_p = _round_up(B, tm)
    if b_p != B:
        x = jnp.pad(x, ((0, b_p - B), (0, 0)))  # only the tail rows are padded

    grid = (b_p // tm,)

    cost = pl.CostEstimate(
        flops=2 * b_p * (din_p * h_p + h_p * dout_p),
        transcendentals=0,
        bytes_accessed=(x.size * 4 + w1p.size * 2 + w2p.size * 2
                        + b1p.size * 4 + b2p.size * 4 + b_p * dout_p * 4),
    )

    resident = pl.Buffered(1)  # fetched once, stays VMEM-resident

    out = pl.pallas_call(
        _mlp_kernel,
        out_shape=jax.ShapeDtypeStruct((b_p, dout_p), jnp.float32),
        grid_spec=pltpu.PrefetchScalarGridSpec(
            num_scalar_prefetch=0,
            grid=grid,
            in_specs=[
                pl.BlockSpec((tm, din_p), lambda i: (i, 0)),   # x tile (pipelined)
                pl.BlockSpec((din_p, h_p), lambda i: (0, 0), pipeline_mode=resident),
                pl.BlockSpec((1, h_p), lambda i: (0, 0), pipeline_mode=resident),
                pl.BlockSpec((h_p, dout_p), lambda i: (0, 0), pipeline_mode=resident),
                pl.BlockSpec((1, dout_p), lambda i: (0, 0), pipeline_mode=resident),
            ],
            out_specs=pl.BlockSpec((tm, dout_p), lambda i: (i, 0)),
        ),
        compiler_params=pltpu.CompilerParams(
            dimension_semantics=("parallel",),
        ),
        cost_estimate=cost,
    )(x, w1p, b1p, w2p, b2p)

    # Strip batch and lane padding back to the module's (B, 10) output.
    return out[:B, :d_out]


if __name__ == "__main__":
    # Small shapes consistent with the module:
    #   data_x_dim = data_y_dim = 16  -> input features = 256
    #   hidden = param_counts[0] * 10^3 = 1000
    #   output = 10
    B, DX, DY = 4, 16, 16
    D_IN = DX * DY
    HIDDEN = 1 * 10 ** 3
    D_OUT = 10

    key = jax.random.PRNGKey(0)
    k_x, k_w1, k_b1, k_w2, k_b2 = jax.random.split(key, 5)

    x_img = jax.random.normal(k_x, (B, 1, DX, DY), dtype=jnp.float32)  # NCHW

    # PyTorch-Linear-style uniform init, stored pre-transposed as (in, out).
    bound1 = 1.0 / (D_IN ** 0.5)
    w1 = jax.random.uniform(k_w1, (D_IN, HIDDEN), jnp.float32, -bound1, bound1)
    b1 = jax.random.uniform(k_b1, (HIDDEN,), jnp.float32, -bound1, bound1)
    bound2 = 1.0 / (HIDDEN ** 0.5)
    w2 = jax.random.uniform(k_w2, (HIDDEN, D_OUT), jnp.float32, -bound2, bound2)
    b2 = jax.random.uniform(k_b2, (D_OUT,), jnp.float32, -bound2, bound2)

    # One-time weight packing (pad + bf16 cast), reused across every forward.
    (w1p, b1p, w2p, b2p), (d_in, d_out) = prepare_mlp_params(w1, b1, w2, b2)

    out = mlp_forward(x_img, w1p, b1p, w2p, b2p, d_in=d_in, d_out=d_out)
    out = jax.block_until_ready(out)
    assert out.shape == (B, D_OUT)

    # Reference with the same bf16 storage precision (f32 accumulation):
    xb = x_img.reshape(B, D_IN).astype(jnp.bfloat16).astype(jnp.float32)
    w1b = w1.astype(jnp.bfloat16).astype(jnp.float32)
    w2b = w2.astype(jnp.bfloat16).astype(jnp.float32)
    h_ref = jnp.maximum(xb @ w1b + b1, 0.0)
    h_ref = h_ref.astype(jnp.bfloat16).astype(jnp.float32)
    ref_bf16 = jnp.maximum(h_ref @ w2b + b2, 0.0)
    assert jnp.allclose(out, ref_bf16, atol=2e-3, rtol=2e-3), "mismatch vs bf16 ref"

    # Loose check against the pure-f32 PyTorch-equivalent forward.
    # (Final ReLU on the logits matches the reference module's forward.)
    x_flat = x_img.reshape(B, D_IN)
    ref_f32 = jnp.maximum(x_flat @ w1 + b1, 0.0)
    ref_f32 = jnp.maximum(ref_f32 @ w2 + b2, 0.0)
    assert jnp.allclose(out, ref_f32, atol=5e-2, rtol=5e-2), "drift vs f32 ref"

    print("KERNEL_OK")
</pallas_src>

<mosaic_0001>
module attributes {stable_mosaic.version = 11 : i64} {
  func.func @_mlp_kernel(%arg0: i32, %arg1: memref<8x256xf32, #tpu.memory_space<vmem>>, %arg2: memref<256x1024xbf16, #tpu.memory_space<vmem>>, %arg3: memref<1x1024xf32, #tpu.memory_space<vmem>>, %arg4: memref<1024x128xbf16, #tpu.memory_space<vmem>>, %arg5: memref<1x128xf32, #tpu.memory_space<vmem>>, %arg6: memref<8x128xf32, #tpu.memory_space<vmem>>) attributes {dimension_semantics = [#tpu.dimension_semantics<parallel>], iteration_bounds = array<i64: 1>, scalar_prefetch = 0 : i64, scratch_operands = 0 : i64, tpu.core_type = #tpu.core_type<tc>, window_params = [{transform_indices = @transform_0, window_bounds = array<i64: 8, 256>}, {pipeline_mode = #tpu.pipeline_mode<synchronous>, transform_indices = @transform_1, window_bounds = array<i64: 256, 1024>}, {pipeline_mode = #tpu.pipeline_mode<synchronous>, transform_indices = @transform_2, window_bounds = array<i64: 1, 1024>}, {pipeline_mode = #tpu.pipeline_mode<synchronous>, transform_indices = @transform_3, window_bounds = array<i64: 1024, 128>}, {pipeline_mode = #tpu.pipeline_mode<synchronous>, transform_indices = @transform_4, window_bounds = array<i64: 1, 128>}, {transform_indices = @transform_5, window_bounds = array<i64: 8, 128>}]} {
    %c0 = arith.constant 0 : index
    %c0_0 = arith.constant 0 : index
    %0 = vector.load %arg1[%c0, %c0_0] : memref<8x256xf32, #tpu.memory_space<vmem>>, vector<8x256xf32>
    %1 = arith.truncf %0 : vector<8x256xf32> to vector<8x256xbf16>
    %c0_1 = arith.constant 0 : index
    %c0_2 = arith.constant 0 : index
    %2 = vector.load %arg2[%c0_1, %c0_2] : memref<256x1024xbf16, #tpu.memory_space<vmem>>, vector<256x1024xbf16>
    %cst = arith.constant dense<0.000000e+00> : vector<8x1024xf32>
    %3 = tpu.matmul %1, %2, %cst {dimension_numbers = #tpu.dot_dimension_numbers<[1], [0], [0], [1], [0, 0, 1, 1], [], []>} : vector<8x256xbf16>, vector<256x1024xbf16>, vector<8x1024xf32> -> vector<8x1024xf32>
    %c0_3 = arith.constant 0 : index
    %c0_4 = arith.constant 0 : index
    %4 = vector.load %arg3[%c0_3, %c0_4] : memref<1x1024xf32, #tpu.memory_space<vmem>>, vector<1x1024xf32>
    %5 = vector.broadcast %4 : vector<1x1024xf32> to vector<8x1024xf32>
    %6 = arith.addf %3, %5 : vector<8x1024xf32>
    %cst_5 = arith.constant 0.000000e+00 : f32
    %7 = vector.broadcast %cst_5 : f32 to vector<8x1024xf32>
    %8 = arith.maximumf %6, %7 : vector<8x1024xf32>
    %9 = arith.truncf %8 : vector<8x1024xf32> to vector<8x1024xbf16>
    %c0_6 = arith.constant 0 : index
    %c0_7 = arith.constant 0 : index
    %10 = vector.load %arg4[%c0_6, %c0_7] : memref<1024x128xbf16, #tpu.memory_space<vmem>>, vector<1024x128xbf16>
    %cst_8 = arith.constant dense<0.000000e+00> : vector<8x128xf32>
    %11 = tpu.matmul %9, %10, %cst_8 {dimension_numbers = #tpu.dot_dimension_numbers<[1], [0], [0], [1], [0, 0, 1, 1], [], []>} : vector<8x1024xbf16>, vector<1024x128xbf16>, vector<8x128xf32> -> vector<8x128xf32>
    %c0_9 = arith.constant 0 : index
    %c0_10 = arith.constant 0 : index
    %12 = vector.load %arg5[%c0_9, %c0_10] : memref<1x128xf32, #tpu.memory_space<vmem>>, vector<1x128xf32>
    %13 = vector.broadcast %12 : vector<1x128xf32> to vector<8x128xf32>
    %14 = arith.addf %11, %13 : vector<8x128xf32>
    %cst_11 = arith.constant 0.000000e+00 : f32
    %15 = vector.broadcast %cst_11 : f32 to vector<8x128xf32>
    %16 = arith.maximumf %14, %15 : vector<8x128xf32>
    %c0_12 = arith.constant 0 : index
    %c0_13 = arith.constant 0 : index
    %17 = vector.load %arg6[%c0_12, %c0_13] : memref<8x128xf32, #tpu.memory_space<vmem>>, vector<8x128xf32>
    tpu.vector_store %arg6[%c0_12, %c0_13], %16 {strides = array<i32>} : memref<8x128xf32, #tpu.memory_space<vmem>>, vector<8x128xf32>,
    return
  }
  func.func @transform_0(%arg0: i32) -> (i32, i32) {
    %c0_i32 = arith.constant 0 : i32
    %c0_i32_0 = arith.constant 0 : i32
    return %arg0, %c0_i32 : i32, i32
  }
  func.func @transform_1(%arg0: i32) -> (i32, i32) {
    %c0_i32 = arith.constant 0 : i32
    %c0_i32_0 = arith.constant 0 : i32
    %c0_i32_1 = arith.constant 0 : i32
    return %c0_i32, %c0_i32_0 : i32, i32
  }
  func.func @transform_2(%arg0: i32) -> (i32, i32) {
    %c0_i32 = arith.constant 0 : i32
    %c0_i32_0 = arith.constant 0 : i32
    %c0_i32_1 = arith.constant 0 : i32
    return %c0_i32, %c0_i32_0 : i32, i32
  }
  func.func @transform_3(%arg0: i32) -> (i32, i32) {
    %c0_i32 = arith.constant 0 : i32
    %c0_i32_0 = arith.constant 0 : i32
    %c0_i32_1 = arith.constant 0 : i32
    return %c0_i32, %c0_i32_0 : i32, i32
  }
  func.func @transform_4(%arg0: i32) -> (i32, i32) {
    %c0_i32 = arith.constant 0 : i32
    %c0_i32_0 = arith.constant 0 : i32
    %c0_i32_1 = arith.constant 0 : i32
    return %c0_i32, %c0_i32_0 : i32, i32
  }
  func.func @transform_5(%arg0: i32) -> (i32, i32) {
    %c0_i32 = arith.constant 0 : i32
    %c0_i32_0 = arith.constant 0 : i32
    return %arg0, %c0_i32 : i32, i32
  }
}

</mosaic_0001>

<llo_original>
// kernel: mlp_forward.1
$region0: #{mlp_forward.1}
  #allocation0 [shape = 'u32[]', space=smem, size = 0x4, offset = 0x4, fixed_abs, tag = 'smem constant byte address 0x4 - core index']
  #allocation1 [shape = 'u32[144,128]{1,0:T(1,128)}', space=vmem, size = 0x12000, scoped, tag = 'internal scratch']
  %s0 = inlined_call_operand.vmem [shape: f32[8,256], index: 0, kind: input, shape index: {}]
  %s1 = inlined_call_operand.hbm [shape: bf16[256,1024], index: 1, kind: input, shape index: {}]
  %s2 = inlined_call_operand.vmem [shape: f32[1,1024], index: 2, kind: input, shape index: {}]
  %s3 = inlined_call_operand.hbm [shape: bf16[1024,128], index: 3, kind: input, shape index: {}]
  %s4 = inlined_call_operand.vmem [shape: f32[1,128], index: 4, kind: input, shape index: {}]
  %s5 = inlined_call_operand.vmem [shape: f32[8,128], index: 5, kind: output, shape index: {}]
  %s6 = sld [smem:[#allocation0]]
  $region38: #{mlp_forward.1} parent=0
    _
  %s8 = ssub.s32 1, %s6
  %s9 = scalar_select 0, %s8, %s6
  $region1: #{mlp_forward.1} parent=0
    #allocation2 [shape = 'u8[524288]{0}', space=vmem, size = 0x80000, scoped, tag = 'input window, operand 1, single buffered']
    #allocation3 [shape = 's32[1]{0}', space=sflag, size = 0x4, scoped, tag = 'scoped memory for mlp_forward.1']
    #allocation4 [shape = 'u8[262144]{0}', space=vmem, size = 0x40000, scoped, tag = 'input window, operand 3, single buffered']
    #allocation5 [shape = 's32[1]{0}', space=sflag, size = 0x4, scoped, tag = 'scoped memory for mlp_forward.1']
    %10 = vsyncpa [#allocation3], 0
    %11 = vsyncpa [#allocation5], 0
    // Predicated region
    $region2: #{mlp_forward.1} parent=1 // pred_check
      _
    $region3: #{mlp_forward.1} parent=1 // pred_check_branch
      %13 = sbr.rel (0) target = $region5
    $region4: #{mlp_forward.1} parent=1 // pred_region
      _
    $region5: #{mlp_forward.1} parent=1 // pred_fallthru
      _
    // Predicated region
    $region6: #{mlp_forward.1} parent=1 // pred_check
      _
    $region7: #{mlp_forward.1} parent=1 // pred_check_branch
      %15 = sbr.rel (0) target = $region9
    $region8: #{mlp_forward.1} parent=1 // pred_region
      %s17 = ssub.s32 16384, 16384
      %18 = vsyncadd [#allocation3], %s17
      %s19 = sshll.u32 [#allocation2], 4
      %s20 = int_to_ptr.vmem [resolvable:$true] %s19
      %25 = dma.hbm_to_vmem [thread:$0]  %s1, 16384, %s20, [#allocation3], 512, 512, 32
    $region9: #{mlp_forward.1} parent=1 // pred_fallthru
      _
    // Predicated region
    $region10: #{mlp_forward.1} parent=1 // pred_check
      _
    $region11: #{mlp_forward.1} parent=1 // pred_check_branch
      %27 = sbr.rel (0) target = $region13
    $region12: #{mlp_forward.1} parent=1 // pred_region
      _
    $region13: #{mlp_forward.1} parent=1 // pred_fallthru
      _
    // Predicated region
    $region14: #{mlp_forward.1} parent=1 // pred_check
      _
    $region15: #{mlp_forward.1} parent=1 // pred_check_branch
      %29 = sbr.rel (0) target = $region17
    $region16: #{mlp_forward.1} parent=1 // pred_region
      %s31 = ssub.s32 8192, 8192
      %32 = vsyncadd [#allocation5], %s31
      %s33 = sshll.u32 [#allocation4], 4
      %s34 = int_to_ptr.vmem [resolvable:$true] %s33
      %39 = dma.hbm_to_vmem [thread:$0]  %s3, 8192, %s34, [#allocation5], 64, 64, 4
    $region17: #{mlp_forward.1} parent=1 // pred_fallthru
      _
    // Predicated region
    $region18: #{mlp_forward.1} parent=1 // pred_check
      _
    $region19: #{mlp_forward.1} parent=1 // pred_check_branch
      %41 = sbr.rel (0) target = $region21
    $region20: #{mlp_forward.1} parent=1 // pred_region
      _
    $region21: #{mlp_forward.1} parent=1 // pred_fallthru
      _
    // Predicated region
    $region22: #{mlp_forward.1} parent=1 // pred_check
      _
    $region23: #{mlp_forward.1} parent=1 // pred_check_branch
      %43 = sbr.rel (0) target = $region25
    $region24: #{mlp_forward.1} parent=1 // pred_region
      %44 = dma.done [#allocation3], 16384
    $region25: #{mlp_forward.1} parent=1 // pred_fallthru
      _
    // Predicated region
    $region26: #{mlp_forward.1} parent=1 // pred_check
      _
    $region27: #{mlp_forward.1} parent=1 // pred_check_branch
      %46 = sbr.rel (0) target = $region29
    $region28: #{mlp_forward.1} parent=1 // pred_region
      %47 = dma.done [#allocation5], 8192
    $region29: #{mlp_forward.1} parent=1 // pred_fallthru
      _
    %v49 = vld [vmem:[%s0] sm:$0xff]
    %v50 = vld [vmem:[%s0 + $0x8] sm:$0xff]
    %v51 = vpack.c.bf16 %v49, %v49
    %v52 = vpack.c.bf16 %v50, %v50
    %v53 = vld [vmem:[#allocation2] sm:$0xff]
    %v54 = vld [vmem:[#allocation2 + $0x8] sm:$0xff]
    %v55 = vld [vmem:[#allocation2 + $0x10] sm:$0xff]
    %v56 = vld [vmem:[#allocation2 + $0x18] sm:$0xff]
    %v57 = vld [vmem:[#allocation2 + $0x20] sm:$0xff]
    %v58 = vld [vmem:[#allocation2 + $0x28] sm:$0xff]
    %v59 = vld [vmem:[#allocation2 + $0x30] sm:$0xff]
    %v60 = vld [vmem:[#allocation2 + $0x38] sm:$0xff]
    %v61 = vld [vmem:[#allocation2 + $0x40] sm:$0xff]
    %v62 = vld [vmem:[#allocation2 + $0x48] sm:$0xff]
    %v63 = vld [vmem:[#allocation2 + $0x50] sm:$0xff]
    %v64 = vld [vmem:[#allocation2 + $0x58] sm:$0xff]
    %v65 = vld [vmem:[#allocation2 + $0x60] sm:$0xff]
    %v66 = vld [vmem:[#allocation2 + $0x68] sm:$0xff]
    %v67 = vld [vmem:[#allocation2 + $0x70] sm:$0xff]
    %v68 = vld [vmem:[#allocation2 + $0x78] sm:$0xff]
    %v69 = vld [vmem:[#allocation2 + $0x80] sm:$0xff]
    %v70 = vld [vmem:[#allocation2 + $0x88] sm:$0xff]
    %v71 = vld [vmem:[#allocation2 + $0x90] sm:$0xff]
    %v72 = vld [vmem:[#allocation2 + $0x98] sm:$0xff]
    %v73 = vld [vmem:[#allocation2 + $0xa0] sm:$0xff]
    %v74 = vld [vmem:[#allocation2 + $0xa8] sm:$0xff]
    %v75 = vld [vmem:[#allocation2 + $0xb0] sm:$0xff]
    %v76 = vld [vmem:[#allocation2 + $0xb8] sm:$0xff]
    %v77 = vld [vmem:[#allocation2 + $0xc0] sm:$0xff]
    %v78 = vld [vmem:[#allocation2 + $0xc8] sm:$0xff]
    %v79 = vld [vmem:[#allocation2 + $0xd0] sm:$0xff]
    %v80 = vld [vmem:[#allocation2 + $0xd8] sm:$0xff]
    %v81 = vld [vmem:[#allocation2 + $0xe0] sm:$0xff]
    %v82 = vld [vmem:[#allocation2 + $0xe8] sm:$0xff]
    %v83 = vld [vmem:[#allocation2 + $0xf0] sm:$0xff]
    %v84 = vld [vmem:[#allocation2 + $0xf8] sm:$0xff]
    %v85 = vld [vmem:[#allocation2 + $0x100] sm:$0xff]
    %v86 = vld [vmem:[#allocation2 + $0x108] sm:$0xff]
    %v87 = vld [vmem:[#allocation2 + $0x110] sm:$0xff]
    %v88 = vld [vmem:[#allocation2 + $0x118] sm:$0xff]
    %v89 = vld [vmem:[#allocation2 + $0x120] sm:$0xff]
    %v90 = vld [vmem:[#allocation2 + $0x128] sm:$0xff]
    %v91 = vld [vmem:[#allocation2 + $0x130] sm:$0xff]
    %v92 = vld [vmem:[#allocation2 + $0x138] sm:$0xff]
    %v93 = vld [vmem:[#allocation2 + $0x140] sm:$0xff]
    %v94 = vld [vmem:[#allocation2 + $0x148] sm:$0xff]
    %v95 = vld [vmem:[#allocation2 + $0x150] sm:$0xff]
    %v96 = vld [vmem:[#allocation2 + $0x158] sm:$0xff]
    %v97 = vld [vmem:[#allocation2 + $0x160] sm:$0xff]
    %v98 = vld [vmem:[#allocation2 + $0x168] sm:$0xff]
    %v99 = vld [vmem:[#allocation2 + $0x170] sm:$0xff]
    %v100 = vld [vmem:[#allocation2 + $0x178] sm:$0xff]
    %v101 = vld [vmem:[#allocation2 + $0x180] sm:$0xff]
    %v102 = vld [vmem:[#allocation2 + $0x188] sm:$0xff]
    %v103 = vld [vmem:[#allocation2 + $0x190] sm:$0xff]
    %v104 = vld [vmem:[#allocation2 + $0x198] sm:$0xff]
    %v105 = vld [vmem:[#allocation2 + $0x1a0] sm:$0xff]
    %v106 = vld [vmem:[#allocation2 + $0x1a8] sm:$0xff]
    %v107 = vld [vmem:[#allocation2 + $0x1b0] sm:$0xff]
    %v108 = vld [vmem:[#allocation2 + $0x1b8] sm:$0xff]
    %v109 = vld [vmem:[#allocation2 + $0x1c0] sm:$0xff]
    %v110 = vld [vmem:[#allocation2 + $0x1c8] sm:$0xff]
    %v111 = vld [vmem:[#allocation2 + $0x1d0] sm:$0xff]
    %v112 = vld [vmem:[#allocation2 + $0x1d8] sm:$0xff]
    %v113 = vld [vmem:[#allocation2 + $0x1e0] sm:$0xff]
    %v114 = vld [vmem:[#allocation2 + $0x1e8] sm:$0xff]
    %v115 = vld [vmem:[#allocation2 + $0x1f0] sm:$0xff]
    %v116 = vld [vmem:[#allocation2 + $0x1f8] sm:$0xff]
    %v117 = vld [vmem:[#allocation2 + $0x200] sm:$0xff]
    %v118 = vld [vmem:[#allocation2 + $0x208] sm:$0xff]
    %v119 = vld [vmem:[#allocation2 + $0x210] sm:$0xff]
    %v120 = vld [vmem:[#allocation2 + $0x218] sm:$0xff]
    %v121 = vld [vmem:[#allocation2 + $0x220] sm:$0xff]
    %v122 = vld [vmem:[#allocation2 + $0x228] sm:$0xff]
    %v123 = vld [vmem:[#allocation2 + $0x230] sm:$0xff]
    %v124 = vld [vmem:[#allocation2 + $0x238] sm:$0xff]
    %v125 = vld [vmem:[#allocation2 + $0x240] sm:$0xff]
    %v126 = vld [vmem:[#allocation2 + $0x248] sm:$0xff]
    %v127 = vld [vmem:[#allocation2 + $0x250] sm:$0xff]
    %v128 = vld [vmem:[#allocation2 + $0x258] sm:$0xff]
    %v129 = vld [vmem:[#allocation2 + $0x260] sm:$0xff]
    %v130 = vld [vmem:[#allocation2 + $0x268] sm:$0xff]
    %v131 = vld [vmem:[#allocation2 + $0x270] sm:$0xff]
    %v132 = vld [vmem:[#allocation2 + $0x278] sm:$0xff]
    %v133 = vld [vmem:[#allocation2 + $0x280] sm:$0xff]
    %v134 = vld [vmem:[#allocation2 + $0x288] sm:$0xff]
    %v135 = vld [vmem:[#allocation2 + $0x290] sm:$0xff]
    %v136 = vld [vmem:[#allocation2 + $0x298] sm:$0xff]
    %v137 = vld [vmem:[#allocation2 + $0x2a0] sm:$0xff]
    %v138 = vld [vmem:[#allocation2 + $0x2a8] sm:$0xff]
    %v139 = vld [vmem:[#allocation2 + $0x2b0] sm:$0xff]
    %v140 = vld [vmem:[#allocation2 + $0x2b8] sm:$0xff]
    %v141 = vld [vmem:[#allocation2 + $0x2c0] sm:$0xff]
    %v142 = vld [vmem:[#allocation2 + $0x2c8] sm:$0xff]
    %v143 = vld [vmem:[#allocation2 + $0x2d0] sm:$0xff]
    %v144 = vld [vmem:[#allocation2 + $0x2d8] sm:$0xff]
    %v145 = vld [vmem:[#allocation2 + $0x2e0] sm:$0xff]
    %v146 = vld [vmem:[#allocation2 + $0x2e8] sm:$0xff]
    %v147 = vld [vmem:[#allocation2 + $0x2f0] sm:$0xff]
    %v148 = vld [vmem:[#allocation2 + $0x2f8] sm:$0xff]
    %v149 = vld [vmem:[#allocation2 + $0x300] sm:$0xff]
    %v150 = vld [vmem:[#allocation2 + $0x308] sm:$0xff]
    %v151 = vld [vmem:[#allocation2 + $0x310] sm:$0xff]
    %v152 = vld [vmem:[#allocation2 + $0x318] sm:$0xff]
    %v153 = vld [vmem:[#allocation2 + $0x320] sm:$0xff]
    %v154 = vld [vmem:[#allocation2 + $0x328] sm:$0xff]
    %v155 = vld [vmem:[#allocation2 + $0x330] sm:$0xff]
    %v156 = vld [vmem:[#allocation2 + $0x338] sm:$0xff]
    %v157 = vld [vmem:[#allocation2 + $0x340] sm:$0xff]
    %v158 = vld [vmem:[#allocation2 + $0x348] sm:$0xff]
    %v159 = vld [vmem:[#allocation2 + $0x350] sm:$0xff]
    %v160 = vld [vmem:[#allocation2 + $0x358] sm:$0xff]
    %v161 = vld [vmem:[#allocation2 + $0x360] sm:$0xff]
    %v162 = vld [vmem:[#allocation2 + $0x368] sm:$0xff]
    %v163 = vld [vmem:[#allocation2 + $0x370] sm:$0xff]
    %v164 = vld [vmem:[#allocation2 + $0x378] sm:$0xff]
    %v165 = vld [vmem:[#allocation2 + $0x380] sm:$0xff]
    %v166 = vld [vmem:[#allocation2 + $0x388] sm:$0xff]
    %v167 = vld [vmem:[#allocation2 + $0x390] sm:$0xff]
    %v168 = vld [vmem:[#allocation2 + $0x398] sm:$0xff]
    %v169 = vld [vmem:[#allocation2 + $0x3a0] sm:$0xff]
    %v170 = vld [vmem:[#allocation2 + $0x3a8] sm:$0xff]
    %v171 = vld [vmem:[#allocation2 + $0x3b0] sm:$0xff]
    %v172 = vld [vmem:[#allocation2 + $0x3b8] sm:$0xff]
    %v173 = vld [vmem:[#allocation2 + $0x3c0] sm:$0xff]
    %v174 = vld [vmem:[#allocation2 + $0x3c8] sm:$0xff]
    %v175 = vld [vmem:[#allocation2 + $0x3d0] sm:$0xff]
    %v176 = vld [vmem:[#allocation2 + $0x3d8] sm:$0xff]
    %v177 = vld [vmem:[#allocation2 + $0x3e0] sm:$0xff]
    %v178 = vld [vmem:[#allocation2 + $0x3e8] sm:$0xff]
    %v179 = vld [vmem:[#allocation2 + $0x3f0] sm:$0xff]
    %v180 = vld [vmem:[#allocation2 + $0x3f8] sm:$0xff]
    %v181 = vld [vmem:[%s2] sm:$0xff]
    %v183 = vlaneseq
    %v184 = vshrl.u32 %v183, 7
    %v185 = vsub.s32 0, %v184
    %v186 = vrot.slane %v181, %v185
    %v187 = vlaneseq
    %v188 = vshrl.u32 %v187, 7
    %v189 = vsub.s32 1, %v188
    %v190 = vrot.slane %v181, %v189
    %v191 = vlaneseq
    %v192 = vshrl.u32 %v191, 7
    %v193 = vsub.s32 2, %v192
    %v194 = vrot.slane %v181, %v193
    %v195 = vlaneseq
    %v196 = vshrl.u32 %v195, 7
    %v197 = vsub.s32 3, %v196
    %v198 = vrot.slane %v181, %v197
    %v199 = vlaneseq
    %v200 = vshrl.u32 %v199, 7
    %v201 = vsub.s32 4, %v200
    %v202 = vrot.slane %v181, %v201
    %v203 = vlaneseq
    %v204 = vshrl.u32 %v203, 7
    %v205 = vsub.s32 5, %v204
    %v206 = vrot.slane %v181, %v205
    %v207 = vlaneseq
    %v208 = vshrl.u32 %v207, 7
    %v209 = vsub.s32 6, %v208
    %v210 = vrot.slane %v181, %v209
    %v211 = vlaneseq
    %v212 = vshrl.u32 %v211, 7
    %v213 = vsub.s32 7, %v212
    %v214 = vrot.slane %v181, %v213
    %v351 = vunpack.c.l.b16 %v53
    %v352 = vunpack.c.h.b16 %v53
    %v353 = vunpack.c.l.b16 %v54
    %v354 = vunpack.c.h.b16 %v54
    %v355 = vunpack.c.l.b16 %v55
    %v356 = vunpack.c.h.b16 %v55
    %v357 = vunpack.c.l.b16 %v56
    %v358 = vunpack.c.h.b16 %v56
    %v359 = vunpack.c.l.b16 %v57
    %v360 = vunpack.c.h.b16 %v57
    %v361 = vunpack.c.l.b16 %v58
    %v362 = vunpack.c.h.b16 %v58
    %v363 = vunpack.c.l.b16 %v59
    %v364 = vunpack.c.h.b16 %v59
    %v365 = vunpack.c.l.b16 %v60
    %v366 = vunpack.c.h.b16 %v60
    %v367 = vunpack.c.l.b16 %v61
    %v368 = vunpack.c.h.b16 %v61
    %v369 = vunpack.c.l.b16 %v62
    %v370 = vunpack.c.h.b16 %v62
    %v371 = vunpack.c.l.b16 %v63
    %v372 = vunpack.c.h.b16 %v63
    %v373 = vunpack.c.l.b16 %v64
    %v374 = vunpack.c.h.b16 %v64
    %v375 = vunpack.c.l.b16 %v65
    %v376 = vunpack.c.h.b16 %v65
    %v377 = vunpack.c.l.b16 %v66
    %v378 = vunpack.c.h.b16 %v66
    %v379 = vunpack.c.l.b16 %v67
    %v380 = vunpack.c.h.b16 %v67
    %v381 = vunpack.c.l.b16 %v68
    %v382 = vunpack.c.h.b16 %v68
    %v383 = vunpack.c.l.b16 %v69
    %v384 = vunpack.c.h.b16 %v69
    %v385 = vunpack.c.l.b16 %v70
    %v386 = vunpack.c.h.b16 %v70
    %v387 = vunpack.c.l.b16 %v71
    %v388 = vunpack.c.h.b16 %v71
    %v389 = vunpack.c.l.b16 %v72
    %v390 = vunpack.c.h.b16 %v72
    %v391 = vunpack.c.l.b16 %v73
    %v392 = vunpack.c.h.b16 %v73
    %v393 = vunpack.c.l.b16 %v74
    %v394 = vunpack.c.h.b16 %v74
    %v395 = vunpack.c.l.b16 %v75
    %v396 = vunpack.c.h.b16 %v75
    %v397 = vunpack.c.l.b16 %v76
    %v398 = vunpack.c.h.b16 %v76
    %v399 = vunpack.c.l.b16 %v77
    %v400 = vunpack.c.h.b16 %v77
    %v401 = vunpack.c.l.b16 %v78
    %v402 = vunpack.c.h.b16 %v78
    %v403 = vunpack.c.l.b16 %v79
    %v404 = vunpack.c.h.b16 %v79
    %v405 = vunpack.c.l.b16 %v80
    %v406 = vunpack.c.h.b16 %v80
    %v407 = vunpack.c.l.b16 %v81
    %v408 = vunpack.c.h.b16 %v81
    %v409 = vunpack.c.l.b16 %v82
    %v410 = vunpack.c.h.b16 %v82
    %v411 = vunpack.c.l.b16 %v83
    %v412 = vunpack.c.h.b16 %v83
    %v413 = vunpack.c.l.b16 %v84
    %v414 = vunpack.c.h.b16 %v84
    %v415 = vunpack.c.l.b16 %v85
    %v416 = vunpack.c.h.b16 %v85
    %v417 = vunpack.c.l.b16 %v86
    %v418 = vunpack.c.h.b16 %v86
    %v419 = vunpack.c.l.b16 %v87
    %v420 = vunpack.c.h.b16 %v87
    %v421 = vunpack.c.l.b16 %v88
    %v422 = vunpack.c.h.b16 %v88
    %v423 = vunpack.c.l.b16 %v89
    %v424 = vunpack.c.h.b16 %v89
    %v425 = vunpack.c.l.b16 %v90
    %v426 = vunpack.c.h.b16 %v90
    %v427 = vunpack.c.l.b16 %v91
    %v428 = vunpack.c.h.b16 %v91
    %v429 = vunpack.c.l.b16 %v92
    %v430 = vunpack.c.h.b16 %v92
    %v431 = vunpack.c.l.b16 %v93
    %v432 = vunpack.c.h.b16 %v93
    %v433 = vunpack.c.l.b16 %v94
    %v434 = vunpack.c.h.b16 %v94
    %v435 = vunpack.c.l.b16 %v95
    %v436 = vunpack.c.h.b16 %v95
    %v437 = vunpack.c.l.b16 %v96
    %v438 = vunpack.c.h.b16 %v96
    %v439 = vunpack.c.l.b16 %v97
    %v440 = vunpack.c.h.b16 %v97
    %v441 = vunpack.c.l.b16 %v98
    %v442 = vunpack.c.h.b16 %v98
    %v443 = vunpack.c.l.b16 %v99
    %v444 = vunpack.c.h.b16 %v99
    %v445 = vunpack.c.l.b16 %v100
    %v446 = vunpack.c.h.b16 %v100
    %v447 = vunpack.c.l.b16 %v101
    %v448 = vunpack.c.h.b16 %v101
    %v449 = vunpack.c.l.b16 %v102
    %v450 = vunpack.c.h.b16 %v102
    %v451 = vunpack.c.l.b16 %v103
    %v452 = vunpack.c.h.b16 %v103
    %v453 = vunpack.c.l.b16 %v104
    %v454 = vunpack.c.h.b16 %v104
    %v455 = vunpack.c.l.b16 %v105
    %v456 = vunpack.c.h.b16 %v105
    %v457 = vunpack.c.l.b16 %v106
    %v458 = vunpack.c.h.b16 %v106
    %v459 = vunpack.c.l.b16 %v107
    %v460 = vunpack.c.h.b16 %v107
    %v461 = vunpack.c.l.b16 %v108
    %v462 = vunpack.c.h.b16 %v108
    %v463 = vunpack.c.l.b16 %v109
    %v464 = vunpack.c.h.b16 %v109
    %v465 = vunpack.c.l.b16 %v110
    %v466 = vunpack.c.h.b16 %v110
    %v467 = vunpack.c.l.b16 %v111
    %v468 = vunpack.c.h.b16 %v111
    %v469 = vunpack.c.l.b16 %v112
    %v470 = vunpack.c.h.b16 %v112
    %v471 = vunpack.c.l.b16 %v113
    %v472 = vunpack.c.h.b16 %v113
    %v473 = vunpack.c.l.b16 %v114
    %v474 = vunpack.c.h.b16 %v114
    %v475 = vunpack.c.l.b16 %v115
    %v476 = vunpack.c.h.b16 %v115
    %v477 = vunpack.c.l.b16 %v116
    %v478 = vunpack.c.h.b16 %v116
    %v479 = vunpack.c.l.b16 %v117
    %v480 = vunpack.c.h.b16 %v117
    %v481 = vunpack.c.l.b16 %v118
    %v482 = vunpack.c.h.b16 %v118
    %v483 = vunpack.c.l.b16 %v119
    %v484 = vunpack.c.h.b16 %v119
    %v485 = vunpack.c.l.b16 %v120
    %v486 = vunpack.c.h.b16 %v120
    %v487 = vunpack.c.l.b16 %v121
    %v488 = vunpack.c.h.b16 %v121
    %v489 = vunpack.c.l.b16 %v122
    %v490 = vunpack.c.h.b16 %v122
    %v491 = vunpack.c.l.b16 %v123
    %v492 = vunpack.c.h.b16 %v123
    %v493 = vunpack.c.l.b16 %v124
    %v494 = vunpack.c.h.b16 %v124
    %v495 = vunpack.c.l.b16 %v125
    %v496 = vunpack.c.h.b16 %v125
    %v497 = vunpack.c.l.b16 %v126
    %v498 = vunpack.c.h.b16 %v126
    %v499 = vunpack.c.l.b16 %v127
    %v500 = vunpack.c.h.b16 %v127
    %v501 = vunpack.c.l.b16 %v128
    %v502 = vunpack.c.h.b16 %v128
    %v503 = vunpack.c.l.b16 %v129
    %v504 = vunpack.c.h.b16 %v129
    %v505 = vunpack.c.l.b16 %v130
    %v506 = vunpack.c.h.b16 %v130
    %v507 = vunpack.c.l.b16 %v131
    %v508 = vunpack.c.h.b16 %v131
    %v509 = vunpack.c.l.b16 %v132
    %v510 = vunpack.c.h.b16 %v132
    %v511 = vunpack.c.l.b16 %v133
    %v512 = vunpack.c.h.b16 %v133
    %v513 = vunpack.c.l.b16 %v134
    %v514 = vunpack.c.h.b16 %v134
    %v515 = vunpack.c.l.b16 %v135
    %v516 = vunpack.c.h.b16 %v135
    %v517 = vunpack.c.l.b16 %v136
    %v518 = vunpack.c.h.b16 %v136
    %v519 = vunpack.c.l.b16 %v137
    %v520 = vunpack.c.h.b16 %v137
    %v521 = vunpack.c.l.b16 %v138
    %v522 = vunpack.c.h.b16 %v138
    %v523 = vunpack.c.l.b16 %v139
    %v524 = vunpack.c.h.b16 %v139
    %v525 = vunpack.c.l.b16 %v140
    %v526 = vunpack.c.h.b16 %v140
    %v527 = vunpack.c.l.b16 %v141
    %v528 = vunpack.c.h.b16 %v141
    %v529 = vunpack.c.l.b16 %v142
    %v530 = vunpack.c.h.b16 %v142
    %v531 = vunpack.c.l.b16 %v143
    %v532 = vunpack.c.h.b16 %v143
    %v533 = vunpack.c.l.b16 %v144
    %v534 = vunpack.c.h.b16 %v144
    %v535 = vunpack.c.l.b16 %v145
    %v536 = vunpack.c.h.b16 %v145
    %v537 = vunpack.c.l.b16 %v146
    %v538 = vunpack.c.h.b16 %v146
    %v539 = vunpack.c.l.b16 %v147
    %v540 = vunpack.c.h.b16 %v147
    %v541 = vunpack.c.l.b16 %v148
    %v542 = vunpack.c.h.b16 %v148
    %v543 = vunpack.c.l.b16 %v149
    %v544 = vunpack.c.h.b16 %v149
    %v545 = vunpack.c.l.b16 %v150
    %v546 = vunpack.c.h.b16 %v150
    %v547 = vunpack.c.l.b16 %v151
    %v548 = vunpack.c.h.b16 %v151
    %v549 = vunpack.c.l.b16 %v152
    %v550 = vunpack.c.h.b16 %v152
    %v551 = vunpack.c.l.b16 %v153
    %v552 = vunpack.c.h.b16 %v153
    %v553 = vunpack.c.l.b16 %v154
    %v554 = vunpack.c.h.b16 %v154
    %v555 = vunpack.c.l.b16 %v155
    %v556 = vunpack.c.h.b16 %v155
    %v557 = vunpack.c.l.b16 %v156
    %v558 = vunpack.c.h.b16 %v156
    %v559 = vunpack.c.l.b16 %v157
    %v560 = vunpack.c.h.b16 %v157
    %v561 = vunpack.c.l.b16 %v158
    %v562 = vunpack.c.h.b16 %v158
    %v563 = vunpack.c.l.b16 %v159
    %v564 = vunpack.c.h.b16 %v159
    %v565 = vunpack.c.l.b16 %v160
    %v566 = vunpack.c.h.b16 %v160
    %v567 = vunpack.c.l.b16 %v161
    %v568 = vunpack.c.h.b16 %v161
    %v569 = vunpack.c.l.b16 %v162
    %v570 = vunpack.c.h.b16 %v162
    %v571 = vunpack.c.l.b16 %v163
    %v572 = vunpack.c.h.b16 %v163
    %v573 = vunpack.c.l.b16 %v164
    %v574 = vunpack.c.h.b16 %v164
    %v575 = vunpack.c.l.b16 %v165
    %v576 = vunpack.c.h.b16 %v165
    %v577 = vunpack.c.l.b16 %v166
    %v578 = vunpack.c.h.b16 %v166
    %v579 = vunpack.c.l.b16 %v167
    %v580 = vunpack.c.h.b16 %v167
    %v581 = vunpack.c.l.b16 %v168
    %v582 = vunpack.c.h.b16 %v168
    %v583 = vunpack.c.l.b16 %v169
    %v584 = vunpack.c.h.b16 %v169
    %v585 = vunpack.c.l.b16 %v170
    %v586 = vunpack.c.h.b16 %v170
    %v587 = vunpack.c.l.b16 %v171
    %v588 = vunpack.c.h.b16 %v171
    %v589 = vunpack.c.l.b16 %v172
    %v590 = vunpack.c.h.b16 %v172
    %v591 = vunpack.c.l.b16 %v173
    %v592 = vunpack.c.h.b16 %v173
    %v593 = vunpack.c.l.b16 %v174
    %v594 = vunpack.c.h.b16 %v174
    %v595 = vunpack.c.l.b16 %v175
    %v596 = vunpack.c.h.b16 %v175
    %v597 = vunpack.c.l.b16 %v176
    %v598 = vunpack.c.h.b16 %v176
    %v599 = vunpack.c.l.b16 %v177
    %v600 = vunpack.c.h.b16 %v177
    %v601 = vunpack.c.l.b16 %v178
    %v602 = vunpack.c.h.b16 %v178
    %v603 = vunpack.c.l.b16 %v179
    %v604 = vunpack.c.h.b16 %v179
    %v605 = vunpack.c.l.b16 %v180
    %v606 = vunpack.c.h.b16 %v180
    %v607 = vpack.c.b16 %v359, %v351
    %v608 = vpack.c.b16 %v360, %v352
    %v609 = vpack.c.b16 %v361, %v353
    %v610 = vpack.c.b16 %v362, %v354
    %v611 = vpack.c.b16 %v363, %v355
    %v612 = vpack.c.b16 %v364, %v356
    %v613 = vpack.c.b16 %v365, %v357
    %v614 = vpack.c.b16 %v366, %v358
    %v615 = vpack.c.b16 %v375, %v367
    %v616 = vpack.c.b16 %v376, %v368
    %v617 = vpack.c.b16 %v377, %v369
    %v618 = vpack.c.b16 %v378, %v370
    %v619 = vpack.c.b16 %v379, %v371
    %v620 = vpack.c.b16 %v380, %v372
    %v621 = vpack.c.b16 %v381, %v373
    %v622 = vpack.c.b16 %v382, %v374
    %v623 = vpack.c.b16 %v391, %v383
    %v624 = vpack.c.b16 %v392, %v384
    %v625 = vpack.c.b16 %v393, %v385
    %v626 = vpack.c.b16 %v394, %v386
    %v627 = vpack.c.b16 %v395, %v387
    %v628 = vpack.c.b16 %v396, %v388
    %v629 = vpack.c.b16 %v397, %v389
    %v630 = vpack.c.b16 %v398, %v390
    %v631 = vpack.c.b16 %v407, %v399
    %v632 = vpack.c.b16 %v408, %v400
    %v633 = vpack.c.b16 %v409, %v401
    %v634 = vpack.c.b16 %v410, %v402
    %v635 = vpack.c.b16 %v411, %v403
    %v636 = vpack.c.b16 %v412, %v404
    %v637 = vpack.c.b16 %v413, %v405
    %v638 = vpack.c.b16 %v414, %v406
    %v639 = vpack.c.b16 %v423, %v415
    %v640 = vpack.c.b16 %v424, %v416
    %v641 = vpack.c.b16 %v425, %v417
    %v642 = vpack.c.b16 %v426, %v418
    %v643 = vpack.c.b16 %v427, %v419
    %v644 = vpack.c.b16 %v428, %v420
    %v645 = vpack.c.b16 %v429, %v421
    %v646 = vpack.c.b16 %v430, %v422
    %v647 = vpack.c.b16 %v439, %v431
    %v648 = vpack.c.b16 %v440, %v432
    %v649 = vpack.c.b16 %v441, %v433
    %v650 = vpack.c.b16 %v442, %v434
    %v651 = vpack.c.b16 %v443, %v435
    %v652 = vpack.c.b16 %v444, %v436
    %v653 = vpack.c.b16 %v445, %v437
    %v654 = vpack.c.b16 %v446, %v438
    %v655 = vpack.c.b16 %v455, %v447
    %v656 = vpack.c.b16 %v456, %v448
    %v657 = vpack.c.b16 %v457, %v449
    %v658 = vpack.c.b16 %v458, %v450
    %v659 = vpack.c.b16 %v459, %v451
    %v660 = vpack.c.b16 %v460, %v452
    %v661 = vpack.c.b16 %v461, %v453
    %v662 = vpack.c.b16 %v462, %v454
    %v663 = vpack.c.b16 %v471, %v463
    %v664 = vpack.c.b16 %v472, %v464
    %v665 = vpack.c.b16 %v473, %v465
    %v666 = vpack.c.b16 %v474, %v466
    %v667 = vpack.c.b16 %v475, %v467
    %v668 = vpack.c.b16 %v476, %v468
    %v669 = vpack.c.b16 %v477, %v469
    %v670 = vpack.c.b16 %v478, %v470
    %v671 = vpack.c.b16 %v487, %v479
    %v672 = vpack.c.b16 %v488, %v480
    %v673 = vpack.c.b16 %v489, %v481
    %v674 = vpack.c.b16 %v490, %v482
    %v675 = vpack.c.b16 %v491, %v483
    %v676 = vpack.c.b16 %v492, %v484
    %v677 = vpack.c.b16 %v493, %v485
    %v678 = vpack.c.b16 %v494, %v486
    %v679 = vpack.c.b16 %v503, %v495
    %v680 = vpack.c.b16 %v504, %v496
    %v681 = vpack.c.b16 %v505, %v497
    %v682 = vpack.c.b16 %v506, %v498
    %v683 = vpack.c.b16 %v507, %v499
    %v684 = vpack.c.b16 %v508, %v500
    %v685 = vpack.c.b16 %v509, %v501
    %v686 = vpack.c.b16 %v510, %v502
    %v687 = vpack.c.b16 %v519, %v511
    %v688 = vpack.c.b16 %v520, %v512
    %v689 = vpack.c.b16 %v521, %v513
    %v690 = vpack.c.b16 %v522, %v514
    %v691 = vpack.c.b16 %v523, %v515
    %v692 = vpack.c.b16 %v524, %v516
    %v693 = vpack.c.b16 %v525, %v517
    %v694 = vpack.c.b16 %v526, %v518
    %v695 = vpack.c.b16 %v535, %v527
    %v696 = vpack.c.b16 %v536, %v528
    %v697 = vpack.c.b16 %v537, %v529
    %v698 = vpack.c.b16 %v538, %v530
    %v699 = vpack.c.b16 %v539, %v531
    %v700 = vpack.c.b16 %v540, %v532
    %v701 = vpack.c.b16 %v541, %v533
    %v702 = vpack.c.b16 %v542, %v534
    %v703 = vpack.c.b16 %v551, %v543
    %v704 = vpack.c.b16 %v552, %v544
    %v705 = vpack.c.b16 %v553, %v545
    %v706 = vpack.c.b16 %v554, %v546
    %v707 = vpack.c.b16 %v555, %v547
    %v708 = vpack.c.b16 %v556, %v548
    %v709 = vpack.c.b16 %v557, %v549
    %v710 = vpack.c.b16 %v558, %v550
    %v711 = vpack.c.b16 %v567, %v559
    %v712 = vpack.c.b16 %v568, %v560
    %v713 = vpack.c.b16 %v569, %v561
    %v714 = vpack.c.b16 %v570, %v562
    %v715 = vpack.c.b16 %v571, %v563
    %v716 = vpack.c.b16 %v572, %v564
    %v717 = vpack.c.b16 %v573, %v565
    %v718 = vpack.c.b16 %v574, %v566
    %v719 = vpack.c.b16 %v583, %v575
    %v720 = vpack.c.b16 %v584, %v576
    %v721 = vpack.c.b16 %v585, %v577
    %v722 = vpack.c.b16 %v586, %v578
    %v723 = vpack.c.b16 %v587, %v579
    %v724 = vpack.c.b16 %v588, %v580
    %v725 = vpack.c.b16 %v589, %v581
    %v726 = vpack.c.b16 %v590, %v582
    %v727 = vpack.c.b16 %v599, %v591
    %v728 = vpack.c.b16 %v600, %v592
    %v729 = vpack.c.b16 %v601, %v593
    %v730 = vpack.c.b16 %v602, %v594
    %v731 = vpack.c.b16 %v603, %v595
    %v732 = vpack.c.b16 %v604, %v596
    %v733 = vpack.c.b16 %v605, %v597
    %v734 = vpack.c.b16 %v606, %v598
    %863 = vmatprep.subr.bf16.mxu0 %v664
    %864 = vmatpush1.bf16.msra.mxu0 %v663
    %865 = vmatprep.subr.bf16.mxu0 %v656
    %866 = vmatpush1.bf16.msra.mxu0 %v655
    %867 = vmatprep.subr.bf16.mxu0 %v648
    %868 = vmatpush1.bf16.msra.mxu0 %v647
    %869 = vmatprep.subr.bf16.mxu0 %v640
    %870 = vmatpush1.bf16.msra.mxu0 %v639
    %871 = vmatprep.subr.bf16.mxu0 %v632
    %872 = vmatpush1.bf16.msra.mxu0 %v631
    %873 = vmatprep.subr.bf16.mxu0 %v624
    %874 = vmatpush1.bf16.msra.mxu0 %v623
    %875 = vmatprep.subr.bf16.mxu0 %v616
    %876 = vmatpush1.bf16.msra.mxu0 %v615
    %877 = vmatprep.subr.bf16.mxu0 %v608
    %878 = vmatpush1.bf16.msra.mxu0 %v607
    %879 = vmatprep.subr.bf16.mxu0 %v728
    %880 = vmatpush2.bf16.msra.mxu0 %v727
    %881 = vmatprep.subr.bf16.mxu0 %v720
    %882 = vmatpush2.bf16.msra.mxu0 %v719
    %883 = vmatprep.subr.bf16.mxu0 %v712
    %884 = vmatpush2.bf16.msra.mxu0 %v711
    %885 = vmatprep.subr.bf16.mxu0 %v704
    %886 = vmatpush2.bf16.msra.mxu0 %v703
    %887 = vmatprep.subr.bf16.mxu0 %v696
    %888 = vmatpush2.bf16.msra.mxu0 %v695
    %889 = vmatprep.subr.bf16.mxu0 %v688
    %890 = vmatpush2.bf16.msra.mxu0 %v687
    %891 = vmatprep.subr.bf16.mxu0 %v680
    %892 = vmatpush2.bf16.msra.mxu0 %v679
    %893 = vmatprep.subr.bf16.mxu0 %v672
    %894 = vmatpush2.bf16.msra.mxu0 %v671
    %895 = vmatprep.mubr.bf16.mxu0 %v52
    %896 = vmatmul.mubr.bf16.gmra.mxu0 %v51
    %v897 = vpop.f32.mrf.mxu0
    %v898 = vadd.f32 %v186, %v897
    %v899 = vpop.f32.mrf.mxu0
    %v900 = vadd.f32 %v190, %v899
    %v901 = vpop.f32.mrf.mxu0
    %v902 = vpop.f32.mrf.mxu0
    %903 = vdwg.mxu0
    %904 = vmatprep.subr.bf16.mxu0 %v666
    %905 = vmatpush1.bf16.msra.mxu0 %v665
    %906 = vmatprep.subr.bf16.mxu0 %v658
    %907 = vmatpush1.bf16.msra.mxu0 %v657
    %908 = vmatprep.subr.bf16.mxu0 %v650
    %909 = vmatpush1.bf16.msra.mxu0 %v649
    %910 = vmatprep.subr.bf16.mxu0 %v642
    %911 = vmatpush1.bf16.msra.mxu0 %v641
    %912 = vmatprep.subr.bf16.mxu0 %v634
    %913 = vmatpush1.bf16.msra.mxu0 %v633
    %914 = vmatprep.subr.bf16.mxu0 %v626
    %915 = vmatpush1.bf16.msra.mxu0 %v625
    %916 = vmatprep.subr.bf16.mxu0 %v618
    %917 = vmatpush1.bf16.msra.mxu0 %v617
    %918 = vmatprep.subr.bf16.mxu0 %v610
    %919 = vmatpush1.bf16.msra.mxu0 %v609
    %920 = vmatprep.subr.bf16.mxu0 %v730
    %921 = vmatpush2.bf16.msra.mxu0 %v729
    %922 = vmatprep.subr.bf16.mxu0 %v722
    %923 = vmatpush2.bf16.msra.mxu0 %v721
    %924 = vmatprep.subr.bf16.mxu0 %v714
    %925 = vmatpush2.bf16.msra.mxu0 %v713
    %926 = vmatprep.subr.bf16.mxu0 %v706
    %927 = vmatpush2.bf16.msra.mxu0 %v705
    %928 = vmatprep.subr.bf16.mxu0 %v698
    %929 = vmatpush2.bf16.msra.mxu0 %v697
    %930 = vmatprep.subr.bf16.mxu0 %v690
    %931 = vmatpush2.bf16.msra.mxu0 %v689
    %932 = vmatprep.subr.bf16.mxu0 %v682
    %933 = vmatpush2.bf16.msra.mxu0 %v681
    %934 = vmatprep.subr.bf16.mxu0 %v674
    %935 = vmatpush2.bf16.msra.mxu0 %v673
    %936 = vmatprep.mubr.bf16.mxu0 %v52
    %937 = vmatmul.mubr.bf16.gmra.mxu0 %v51
    %v938 = vpop.f32.mrf.mxu0
    %v939 = vadd.f32 %v194, %v938
    %v940 = vpop.f32.mrf.mxu0
    %v941 = vadd.f32 %v198, %v940
    %v942 = vpop.f32.mrf.mxu0
    %v943 = vpop.f32.mrf.mxu0
    %944 = vdwg.mxu0
    %945 = vmatprep.subr.bf16.mxu0 %v668
    %946 = vmatpush1.bf16.msra.mxu0 %v667
    %947 = vmatprep.subr.bf16.mxu0 %v660
    %948 = vmatpush1.bf16.msra.mxu0 %v659
    %949 = vmatprep.subr.bf16.mxu0 %v652
    %950 = vmatpush1.bf16.msra.mxu0 %v651
    %951 = vmatprep.subr.bf16.mxu0 %v644
    %952 = vmatpush1.bf16.msra.mxu0 %v643
    %953 = vmatprep.subr.bf16.mxu0 %v636
    %954 = vmatpush1.bf16.msra.mxu0 %v635
    %955 = vmatprep.subr.bf16.mxu0 %v628
    %956 = vmatpush1.bf16.msra.mxu0 %v627
    %957 = vmatprep.subr.bf16.mxu0 %v620
    %958 = vmatpush1.bf16.msra.mxu0 %v619
    %959 = vmatprep.subr.bf16.mxu0 %v612
    %960 = vmatpush1.bf16.msra.mxu0 %v611
    %961 = vmatprep.subr.bf16.mxu0 %v732
    %962 = vmatpush2.bf16.msra.mxu0 %v731
    %963 = vmatprep.subr.bf16.mxu0 %v724
    %964 = vmatpush2.bf16.msra.mxu0 %v723
    %965 = vmatprep.subr.bf16.mxu0 %v716
    %966 = vmatpush2.bf16.msra.mxu0 %v715
    %967 = vmatprep.subr.bf16.mxu0 %v708
    %968 = vmatpush2.bf16.msra.mxu0 %v707
    %969 = vmatprep.subr.bf16.mxu0 %v700
    %970 = vmatpush2.bf16.msra.mxu0 %v699
    %971 = vmatprep.subr.bf16.mxu0 %v692
    %972 = vmatpush2.bf16.msra.mxu0 %v691
    %973 = vmatprep.subr.bf16.mxu0 %v684
    %974 = vmatpush2.bf16.msra.mxu0 %v683
    %975 = vmatprep.subr.bf16.mxu0 %v676
    %976 = vmatpush2.bf16.msra.mxu0 %v675
    %977 = vmatprep.mubr.bf16.mxu0 %v52
    %978 = vmatmul.mubr.bf16.gmra.mxu0 %v51
    %v979 = vpop.f32.mrf.mxu0
    %v980 = vadd.f32 %v202, %v979
    %v981 = vpop.f32.mrf.mxu0
    %v982 = vadd.f32 %v206, %v981
    %v983 = vpop.f32.mrf.mxu0
    %v984 = vpop.f32.mrf.mxu0
    %985 = vdwg.mxu0
    %986 = vmatprep.subr.bf16.mxu0 %v670
    %987 = vmatpush1.bf16.msra.mxu0 %v669
    %988 = vmatprep.subr.bf16.mxu0 %v662
    %989 = vmatpush1.bf16.msra.mxu0 %v661
    %990 = vmatprep.subr.bf16.mxu0 %v654
    %991 = vmatpush1.bf16.msra.mxu0 %v653
    %992 = vmatprep.subr.bf16.mxu0 %v646
    %993 = vmatpush1.bf16.msra.mxu0 %v645
    %994 = vmatprep.subr.bf16.mxu0 %v638
    %995 = vmatpush1.bf16.msra.mxu0 %v637
    %996 = vmatprep.subr.bf16.mxu0 %v630
    %997 = vmatpush1.bf16.msra.mxu0 %v629
    %998 = vmatprep.subr.bf16.mxu0 %v622
    %999 = vmatpush1.bf16.msra.mxu0 %v621
    %1000 = vmatprep.subr.bf16.mxu0 %v614
    %1001 = vmatpush1.bf16.msra.mxu0 %v613
    %1002 = vmatprep.subr.bf16.mxu0 %v734
    %1003 = vmatpush2.bf16.msra.mxu0 %v733
    %1004 = vmatprep.subr.bf16.mxu0 %v726
    %1005 = vmatpush2.bf16.msra.mxu0 %v725
    %1006 = vmatprep.subr.bf16.mxu0 %v718
    %1007 = vmatpush2.bf16.msra.mxu0 %v717
    %1008 = vmatprep.subr.bf16.mxu0 %v710
    %1009 = vmatpush2.bf16.msra.mxu0 %v709
    %1010 = vmatprep.subr.bf16.mxu0 %v702
    %1011 = vmatpush2.bf16.msra.mxu0 %v701
    %1012 = vmatprep.subr.bf16.mxu0 %v694
    %1013 = vmatpush2.bf16.msra.mxu0 %v693
    %1014 = vmatprep.subr.bf16.mxu0 %v686
    %1015 = vmatpush2.bf16.msra.mxu0 %v685
    %1016 = vmatprep.subr.bf16.mxu0 %v678
    %1017 = vmatpush2.bf16.msra.mxu0 %v677
    %1018 = vmatprep.mubr.bf16.mxu0 %v52
    %1019 = vmatmul.mubr.bf16.gmra.mxu0 %v51
    %v1020 = vpop.f32.mrf.mxu0
    %v1021 = vadd.f32 %v210, %v1020
    %v1022 = vpop.f32.mrf.mxu0
    %v1023 = vadd.f32 %v214, %v1022
    %v1024 = vpop.f32.mrf.mxu0
    %v1025 = vpop.f32.mrf.mxu0
    %1026 = vdwg.mxu0
    %v1027 = vmax.f32 %v898, 0.0
    %v1028 = vmax.f32 %v900, 0.0
    %v1029 = vmax.f32 %v939, 0.0
    %v1030 = vmax.f32 %v941, 0.0
    %v1031 = vmax.f32 %v980, 0.0
    %v1032 = vmax.f32 %v982, 0.0
    %v1033 = vmax.f32 %v1021, 0.0
    %v1034 = vmax.f32 %v1023, 0.0
    %v1035 = vpack.c.bf16 %v1027, %v1027
    %v1036 = vpack.c.bf16 %v1028, %v1028
    %v1037 = vpack.c.bf16 %v1029, %v1029
    %v1038 = vpack.c.bf16 %v1030, %v1030
    %v1039 = vpack.c.bf16 %v1031, %v1031
    %v1040 = vpack.c.bf16 %v1032, %v1032
    %v1041 = vpack.c.bf16 %v1033, %v1033
    %v1042 = vpack.c.bf16 %v1034, %v1034
    %v1043 = vld [vmem:[#allocation4] sm:$0xf]
    %v1044 = vld [vmem:[#allocation4 + $0x4] sm:$0xf]
    %v1045 = vld [vmem:[#allocation4 + $0x8] sm:$0xf]
    %v1046 = vld [vmem:[#allocation4 + $0xc] sm:$0xf]
    %v1047 = vld [vmem:[#allocation4 + $0x10] sm:$0xf]
    %v1048 = vld [vmem:[#allocation4 + $0x14] sm:$0xf]
    %v1049 = vld [vmem:[#allocation4 + $0x18] sm:$0xf]
    %v1050 = vld [vmem:[#allocation4 + $0x1c] sm:$0xf]
    %v1051 = vld [vmem:[#allocation4 + $0x20] sm:$0xf]
    %v1052 = vld [vmem:[#allocation4 + $0x24] sm:$0xf]
    %v1053 = vld [vmem:[#allocation4 + $0x28] sm:$0xf]
    %v1054 = vld [vmem:[#allocation4 + $0x2c] sm:$0xf]
    %v1055 = vld [vmem:[#allocation4 + $0x30] sm:$0xf]
    %v1056 = vld [vmem:[#allocation4 + $0x34] sm:$0xf]
    %v1057 = vld [vmem:[#allocation4 + $0x38] sm:$0xf]
    %v1058 = vld [vmem:[#allocation4 + $0x3c] sm:$0xf]
    %v1059 = vld [vmem:[#allocation4 + $0x40] sm:$0xf]
    %v1060 = vld [vmem:[#allocation4 + $0x44] sm:$0xf]
    %v1061 = vld [vmem:[#allocation4 + $0x48] sm:$0xf]
    %v1062 = vld [vmem:[#allocation4 + $0x4c] sm:$0xf]
    %v1063 = vld [vmem:[#allocation4 + $0x50] sm:$0xf]
    %v1064 = vld [vmem:[#allocation4 + $0x54] sm:$0xf]
    %v1065 = vld [vmem:[#allocation4 + $0x58] sm:$0xf]
    %v1066 = vld [vmem:[#allocation4 + $0x5c] sm:$0xf]
    %v1067 = vld [vmem:[#allocation4 + $0x60] sm:$0xf]
    %v1068 = vld [vmem:[#allocation4 + $0x64] sm:$0xf]
    %v1069 = vld [vmem:[#allocation4 + $0x68] sm:$0xf]
    %v1070 = vld [vmem:[#allocation4 + $0x6c] sm:$0xf]
    %v1071 = vld [vmem:[#allocation4 + $0x70] sm:$0xf]
    %v1072 = vld [vmem:[#allocation4 + $0x74] sm:$0xf]
    %v1073 = vld [vmem:[#allocation4 + $0x78] sm:$0xf]
    %v1074 = vld [vmem:[#allocation4 + $0x7c] sm:$0xf]
    %v1075 = vld [vmem:[#allocation4 + $0x80] sm:$0xf]
    %v1076 = vld [vmem:[#allocation4 + $0x84] sm:$0xf]
    %v1077 = vld [vmem:[#allocation4 + $0x88] sm:$0xf]
    %v1078 = vld [vmem:[#allocation4 + $0x8c] sm:$0xf]
    %v1079 = vld [vmem:[#allocation4 + $0x90] sm:$0xf]
    %v1080 = vld [vmem:[#allocation4 + $0x94] sm:$0xf]
    %v1081 = vld [vmem:[#allocation4 + $0x98] sm:$0xf]
    %v1082 = vld [vmem:[#allocation4 + $0x9c] sm:$0xf]
    %v1083 = vld [vmem:[#allocation4 + $0xa0] sm:$0xf]
    %v1084 = vld [vmem:[#allocation4 + $0xa4] sm:$0xf]
    %v1085 = vld [vmem:[#allocation4 + $0xa8] sm:$0xf]
    %v1086 = vld [vmem:[#allocation4 + $0xac] sm:$0xf]
    %v1087 = vld [vmem:[#allocation4 + $0xb0] sm:$0xf]
    %v1088 = vld [vmem:[#allocation4 + $0xb4] sm:$0xf]
    %v1089 = vld [vmem:[#allocation4 + $0xb8] sm:$0xf]
    %v1090 = vld [vmem:[#allocation4 + $0xbc] sm:$0xf]
    %v1091 = vld [vmem:[#allocation4 + $0xc0] sm:$0xf]
    %v1092 = vld [vmem:[#allocation4 + $0xc4] sm:$0xf]
    %v1093 = vld [vmem:[#allocation4 + $0xc8] sm:$0xf]
    %v1094 = vld [vmem:[#allocation4 + $0xcc] sm:$0xf]
    %v1095 = vld [vmem:[#allocation4 + $0xd0] sm:$0xf]
    %v1096 = vld [vmem:[#allocation4 + $0xd4] sm:$0xf]
    %v1097 = vld [vmem:[#allocation4 + $0xd8] sm:$0xf]
    %v1098 = vld [vmem:[#allocation4 + $0xdc] sm:$0xf]
    %v1099 = vld [vmem:[#allocation4 + $0xe0] sm:$0xf]
    %v1100 = vld [vmem:[#allocation4 + $0xe4] sm:$0xf]
    %v1101 = vld [vmem:[#allocation4 + $0xe8] sm:$0xf]
    %v1102 = vld [vmem:[#allocation4 + $0xec] sm:$0xf]
    %v1103 = vld [vmem:[#allocation4 + $0xf0] sm:$0xf]
    %v1104 = vld [vmem:[#allocation4 + $0xf4] sm:$0xf]
    %v1105 = vld [vmem:[#allocation4 + $0xf8] sm:$0xf]
    %v1106 = vld [vmem:[#allocation4 + $0xfc] sm:$0xf]
    %v1107 = vld [vmem:[#allocation4 + $0x100] sm:$0xf]
    %v1108 = vld [vmem:[#allocation4 + $0x104] sm:$0xf]
    %v1109 = vld [vmem:[#allocation4 + $0x108] sm:$0xf]
    %v1110 = vld [vmem:[#allocation4 + $0x10c] sm:$0xf]
    %v1111 = vld [vmem:[#allocation4 + $0x110] sm:$0xf]
    %v1112 = vld [vmem:[#allocation4 + $0x114] sm:$0xf]
    %v1113 = vld [vmem:[#allocation4 + $0x118] sm:$0xf]
    %v1114 = vld [vmem:[#allocation4 + $0x11c] sm:$0xf]
    %v1115 = vld [vmem:[#allocation4 + $0x120] sm:$0xf]
    %v1116 = vld [vmem:[#allocation4 + $0x124] sm:$0xf]
    %v1117 = vld [vmem:[#allocation4 + $0x128] sm:$0xf]
    %v1118 = vld [vmem:[#allocation4 + $0x12c] sm:$0xf]
    %v1119 = vld [vmem:[#allocation4 + $0x130] sm:$0xf]
    %v1120 = vld [vmem:[#allocation4 + $0x134] sm:$0xf]
    %v1121 = vld [vmem:[#allocation4 + $0x138] sm:$0xf]
    %v1122 = vld [vmem:[#allocation4 + $0x13c] sm:$0xf]
    %v1123 = vld [vmem:[#allocation4 + $0x140] sm:$0xf]
    %v1124 = vld [vmem:[#allocation4 + $0x144] sm:$0xf]
    %v1125 = vld [vmem:[#allocation4 + $0x148] sm:$0xf]
    %v1126 = vld [vmem:[#allocation4 + $0x14c] sm:$0xf]
    %v1127 = vld [vmem:[#allocation4 + $0x150] sm:$0xf]
    %v1128 = vld [vmem:[#allocation4 + $0x154] sm:$0xf]
    %v1129 = vld [vmem:[#allocation4 + $0x158] sm:$0xf]
    %v1130 = vld [vmem:[#allocation4 + $0x15c] sm:$0xf]
    %v1131 = vld [vmem:[#allocation4 + $0x160] sm:$0xf]
    %v1132 = vld [vmem:[#allocation4 + $0x164] sm:$0xf]
    %v1133 = vld [vmem:[#allocation4 + $0x168] sm:$0xf]
    %v1134 = vld [vmem:[#allocation4 + $0x16c] sm:$0xf]
    %v1135 = vld [vmem:[#allocation4 + $0x170] sm:$0xf]
    %v1136 = vld [vmem:[#allocation4 + $0x174] sm:$0xf]
    %v1137 = vld [vmem:[#allocation4 + $0x178] sm:$0xf]
    %v1138 = vld [vmem:[#allocation4 + $0x17c] sm:$0xf]
    %v1139 = vld [vmem:[#allocation4 + $0x180] sm:$0xf]
    %v1140 = vld [vmem:[#allocation4 + $0x184] sm:$0xf]
    %v1141 = vld [vmem:[#allocation4 + $0x188] sm:$0xf]
    %v1142 = vld [vmem:[#allocation4 + $0x18c] sm:$0xf]
    %v1143 = vld [vmem:[#allocation4 + $0x190] sm:$0xf]
    %v1144 = vld [vmem:[#allocation4 + $0x194] sm:$0xf]
    %v1145 = vld [vmem:[#allocation4 + $0x198] sm:$0xf]
    %v1146 = vld [vmem:[#allocation4 + $0x19c] sm:$0xf]
    %v1147 = vld [vmem:[#allocation4 + $0x1a0] sm:$0xf]
    %v1148 = vld [vmem:[#allocation4 + $0x1a4] sm:$0xf]
    %v1149 = vld [vmem:[#allocation4 + $0x1a8] sm:$0xf]
    %v1150 = vld [vmem:[#allocation4 + $0x1ac] sm:$0xf]
    %v1151 = vld [vmem:[#allocation4 + $0x1b0] sm:$0xf]
    %v1152 = vld [vmem:[#allocation4 + $0x1b4] sm:$0xf]
    %v1153 = vld [vmem:[#allocation4 + $0x1b8] sm:$0xf]
    %v1154 = vld [vmem:[#allocation4 + $0x1bc] sm:$0xf]
    %v1155 = vld [vmem:[#allocation4 + $0x1c0] sm:$0xf]
    %v1156 = vld [vmem:[#allocation4 + $0x1c4] sm:$0xf]
    %v1157 = vld [vmem:[#allocation4 + $0x1c8] sm:$0xf]
    %v1158 = vld [vmem:[#allocation4 + $0x1cc] sm:$0xf]
    %v1159 = vld [vmem:[#allocation4 + $0x1d0] sm:$0xf]
    %v1160 = vld [vmem:[#allocation4 + $0x1d4] sm:$0xf]
    %v1161 = vld [vmem:[#allocation4 + $0x1d8] sm:$0xf]
    %v1162 = vld [vmem:[#allocation4 + $0x1dc] sm:$0xf]
    %v1163 = vld [vmem:[#allocation4 + $0x1e0] sm:$0xf]
    %v1164 = vld [vmem:[#allocation4 + $0x1e4] sm:$0xf]
    %v1165 = vld [vmem:[#allocation4 + $0x1e8] sm:$0xf]
    %v1166 = vld [vmem:[#allocation4 + $0x1ec] sm:$0xf]
    %v1167 = vld [vmem:[#allocation4 + $0x1f0] sm:$0xf]
    %v1168 = vld [vmem:[#allocation4 + $0x1f4] sm:$0xf]
    %v1169 = vld [vmem:[#allocation4 + $0x1f8] sm:$0xf]
    %v1170 = vld [vmem:[#allocation4 + $0x1fc] sm:$0xf]
    %v1171 = vld [vmem:[%s4] sm:$0x1]
    %v1173 = vlaneseq
    %v1174 = vshrl.u32 %v1173, 7
    %v1175 = vsub.s32 0, %v1174
    %v1176 = vrot.slane %v1171, %v1175
    %v1306 = vunpack.c.l.b16 %v1043
    %v1307 = vunpack.c.l.b16 %v1044
    %v1308 = vunpack.c.l.b16 %v1045
    %v1309 = vunpack.c.l.b16 %v1046
    %v1310 = vunpack.c.l.b16 %v1047
    %v1311 = vunpack.c.l.b16 %v1048
    %v1312 = vunpack.c.l.b16 %v1049
    %v1313 = vunpack.c.l.b16 %v1050
    %v1314 = vunpack.c.l.b16 %v1051
    %v1315 = vunpack.c.l.b16 %v1052
    %v1316 = vunpack.c.l.b16 %v1053
    %v1317 = vunpack.c.l.b16 %v1054
    %v1318 = vunpack.c.l.b16 %v1055
    %v1319 = vunpack.c.l.b16 %v1056
    %v1320 = vunpack.c.l.b16 %v1057
    %v1321 = vunpack.c.l.b16 %v1058
    %v1322 = vunpack.c.l.b16 %v1059
    %v1323 = vunpack.c.l.b16 %v1060
    %v1324 = vunpack.c.l.b16 %v1061
    %v1325 = vunpack.c.l.b16 %v1062
    %v1326 = vunpack.c.l.b16 %v1063
    %v1327 = vunpack.c.l.b16 %v1064
    %v1328 = vunpack.c.l.b16 %v1065
    %v1329 = vunpack.c.l.b16 %v1066
    %v1330 = vunpack.c.l.b16 %v1067
    %v1331 = vunpack.c.l.b16 %v1068
    %v1332 = vunpack.c.l.b16 %v1069
    %v1333 = vunpack.c.l.b16 %v1070
    %v1334 = vunpack.c.l.b16 %v1071
    %v1335 = vunpack.c.l.b16 %v1072
    %v1336 = vunpack.c.l.b16 %v1073
    %v1337 = vunpack.c.l.b16 %v1074
    %v1338 = vunpack.c.l.b16 %v1075
    %v1339 = vunpack.c.l.b16 %v1076
    %v1340 = vunpack.c.l.b16 %v1077
    %v1341 = vunpack.c.l.b16 %v1078
    %v1342 = vunpack.c.l.b16 %v1079
    %v1343 = vunpack.c.l.b16 %v1080
    %v1344 = vunpack.c.l.b16 %v1081
    %v1345 = vunpack.c.l.b16 %v1082
    %v1346 = vunpack.c.l.b16 %v1083
    %v1347 = vunpack.c.l.b16 %v1084
    %v1348 = vunpack.c.l.b16 %v1085
    %v1349 = vunpack.c.l.b16 %v1086
    %v1350 = vunpack.c.l.b16 %v1087
    %v1351 = vunpack.c.l.b16 %v1088
    %v1352 = vunpack.c.l.b16 %v1089
    %v1353 = vunpack.c.l.b16 %v1090
    %v1354 = vunpack.c.l.b16 %v1091
    %v1355 = vunpack.c.l.b16 %v1092
    %v1356 = vunpack.c.l.b16 %v1093
    %v1357 = vunpack.c.l.b16 %v1094
    %v1358 = vunpack.c.l.b16 %v1095
    %v1359 = vunpack.c.l.b16 %v1096
    %v1360 = vunpack.c.l.b16 %v1097
    %v1361 = vunpack.c.l.b16 %v1098
    %v1362 = vunpack.c.l.b16 %v1099
    %v1363 = vunpack.c.l.b16 %v1100
    %v1364 = vunpack.c.l.b16 %v1101
    %v1365 = vunpack.c.l.b16 %v1102
    %v1366 = vunpack.c.l.b16 %v1103
    %v1367 = vunpack.c.l.b16 %v1104
    %v1368 = vunpack.c.l.b16 %v1105
    %v1369 = vunpack.c.l.b16 %v1106
    %v1370 = vunpack.c.l.b16 %v1107
    %v1371 = vunpack.c.l.b16 %v1108
    %v1372 = vunpack.c.l.b16 %v1109
    %v1373 = vunpack.c.l.b16 %v1110
    %v1374 = vunpack.c.l.b16 %v1111
    %v1375 = vunpack.c.l.b16 %v1112
    %v1376 = vunpack.c.l.b16 %v1113
    %v1377 = vunpack.c.l.b16 %v1114
    %v1378 = vunpack.c.l.b16 %v1115
    %v1379 = vunpack.c.l.b16 %v1116
    %v1380 = vunpack.c.l.b16 %v1117
    %v1381 = vunpack.c.l.b16 %v1118
    %v1382 = vunpack.c.l.b16 %v1119
    %v1383 = vunpack.c.l.b16 %v1120
    %v1384 = vunpack.c.l.b16 %v1121
    %v1385 = vunpack.c.l.b16 %v1122
    %v1386 = vunpack.c.l.b16 %v1123
    %v1387 = vunpack.c.l.b16 %v1124
    %v1388 = vunpack.c.l.b16 %v1125
    %v1389 = vunpack.c.l.b16 %v1126
    %v1390 = vunpack.c.l.b16 %v1127
    %v1391 = vunpack.c.l.b16 %v1128
    %v1392 = vunpack.c.l.b16 %v1129
    %v1393 = vunpack.c.l.b16 %v1130
    %v1394 = vunpack.c.l.b16 %v1131
    %v1395 = vunpack.c.l.b16 %v1132
    %v1396 = vunpack.c.l.b16 %v1133
    %v1397 = vunpack.c.l.b16 %v1134
    %v1398 = vunpack.c.l.b16 %v1135
    %v1399 = vunpack.c.l.b16 %v1136
    %v1400 = vunpack.c.l.b16 %v1137
    %v1401 = vunpack.c.l.b16 %v1138
    %v1402 = vunpack.c.l.b16 %v1139
    %v1403 = vunpack.c.l.b16 %v1140
    %v1404 = vunpack.c.l.b16 %v1141
    %v1405 = vunpack.c.l.b16 %v1142
    %v1406 = vunpack.c.l.b16 %v1143
    %v1407 = vunpack.c.l.b16 %v1144
    %v1408 = vunpack.c.l.b16 %v1145
    %v1409 = vunpack.c.l.b16 %v1146
    %v1410 = vunpack.c.l.b16 %v1147
    %v1411 = vunpack.c.l.b16 %v1148
    %v1412 = vunpack.c.l.b16 %v1149
    %v1413 = vunpack.c.l.b16 %v1150
    %v1414 = vunpack.c.l.b16 %v1151
    %v1415 = vunpack.c.l.b16 %v1152
    %v1416 = vunpack.c.l.b16 %v1153
    %v1417 = vunpack.c.l.b16 %v1154
    %v1418 = vunpack.c.l.b16 %v1155
    %v1419 = vunpack.c.l.b16 %v1156
    %v1420 = vunpack.c.l.b16 %v1157
    %v1421 = vunpack.c.l.b16 %v1158
    %v1422 = vunpack.c.l.b16 %v1159
    %v1423 = vunpack.c.l.b16 %v1160
    %v1424 = vunpack.c.l.b16 %v1161
    %v1425 = vunpack.c.l.b16 %v1162
    %v1426 = vunpack.c.l.b16 %v1163
    %v1427 = vunpack.c.l.b16 %v1164
    %v1428 = vunpack.c.l.b16 %v1165
    %v1429 = vunpack.c.l.b16 %v1166
    %v1430 = vunpack.c.l.b16 %v1167
    %v1431 = vunpack.c.l.b16 %v1168
    %v1432 = vunpack.c.l.b16 %v1169
    %v1433 = vunpack.c.l.b16 %v1170
    %v1434 = vpack.c.b16 %v1307, %v1306
    %v1435 = vpack.c.b16 %v1309, %v1308
    %v1436 = vpack.c.b16 %v1311, %v1310
    %v1437 = vpack.c.b16 %v1313, %v1312
    %v1438 = vpack.c.b16 %v1315, %v1314
    %v1439 = vpack.c.b16 %v1317, %v1316
    %v1440 = vpack.c.b16 %v1319, %v1318
    %v1441 = vpack.c.b16 %v1321, %v1320
    %v1442 = vpack.c.b16 %v1323, %v1322
    %v1443 = vpack.c.b16 %v1325, %v1324
    %v1444 = vpack.c.b16 %v1327, %v1326
    %v1445 = vpack.c.b16 %v1329, %v1328
    %v1446 = vpack.c.b16 %v1331, %v1330
    %v1447 = vpack.c.b16 %v1333, %v1332
    %v1448 = vpack.c.b16 %v1335, %v1334
    %v1449 = vpack.c.b16 %v1337, %v1336
    %v1450 = vpack.c.b16 %v1339, %v1338
    %v1451 = vpack.c.b16 %v1341, %v1340
    %v1452 = vpack.c.b16 %v1343, %v1342
    %v1453 = vpack.c.b16 %v1345, %v1344
    %v1454 = vpack.c.b16 %v1347, %v1346
    %v1455 = vpack.c.b16 %v1349, %v1348
    %v1456 = vpack.c.b16 %v1351, %v1350
    %v1457 = vpack.c.b16 %v1353, %v1352
    %v1458 = vpack.c.b16 %v1355, %v1354
    %v1459 = vpack.c.b16 %v1357, %v1356
    %v1460 = vpack.c.b16 %v1359, %v1358
    %v1461 = vpack.c.b16 %v1361, %v1360
    %v1462 = vpack.c.b16 %v1363, %v1362
    %v1463 = vpack.c.b16 %v1365, %v1364
    %v1464 = vpack.c.b16 %v1367, %v1366
    %v1465 = vpack.c.b16 %v1369, %v1368
    %v1466 = vpack.c.b16 %v1371, %v1370
    %v1467 = vpack.c.b16 %v1373, %v1372
    %v1468 = vpack.c.b16 %v1375, %v1374
    %v1469 = vpack.c.b16 %v1377, %v1376
    %v1470 = vpack.c.b16 %v1379, %v1378
    %v1471 = vpack.c.b16 %v1381, %v1380
    %v1472 = vpack.c.b16 %v1383, %v1382
    %v1473 = vpack.c.b16 %v1385, %v1384
    %v1474 = vpack.c.b16 %v1387, %v1386
    %v1475 = vpack.c.b16 %v1389, %v1388
    %v1476 = vpack.c.b16 %v1391, %v1390
    %v1477 = vpack.c.b16 %v1393, %v1392
    %v1478 = vpack.c.b16 %v1395, %v1394
    %v1479 = vpack.c.b16 %v1397, %v1396
    %v1480 = vpack.c.b16 %v1399, %v1398
    %v1481 = vpack.c.b16 %v1401, %v1400
    %v1482 = vpack.c.b16 %v1403, %v1402
    %v1483 = vpack.c.b16 %v1405, %v1404
    %v1484 = vpack.c.b16 %v1407, %v1406
    %v1485 = vpack.c.b16 %v1409, %v1408
    %v1486 = vpack.c.b16 %v1411, %v1410
    %v1487 = vpack.c.b16 %v1413, %v1412
    %v1488 = vpack.c.b16 %v1415, %v1414
    %v1489 = vpack.c.b16 %v1417, %v1416
    %v1490 = vpack.c.b16 %v1419, %v1418
    %v1491 = vpack.c.b16 %v1421, %v1420
    %v1492 = vpack.c.b16 %v1423, %v1422
    %v1493 = vpack.c.b16 %v1425, %v1424
    %v1494 = vpack.c.b16 %v1427, %v1426
    %v1495 = vpack.c.b16 %v1429, %v1428
    %v1496 = vpack.c.b16 %v1431, %v1430
    %v1497 = vpack.c.b16 %v1433, %v1432
    %1562 = vmatprep.subr.bf16.mxu0 0
    %1563 = vmatpush1.bf16.msra.mxu0 %v1441
    %1564 = vmatprep.subr.bf16.mxu0 0
    %1565 = vmatpush1.bf16.msra.mxu0 %v1440
    %1566 = vmatprep.subr.bf16.mxu0 0
    %1567 = vmatpush1.bf16.msra.mxu0 %v1439
    %1568 = vmatprep.subr.bf16.mxu0 0
    %1569 = vmatpush1.bf16.msra.mxu0 %v1438
    %1570 = vmatprep.subr.bf16.mxu0 0
    %1571 = vmatpush1.bf16.msra.mxu0 %v1437
    %1572 = vmatprep.subr.bf16.mxu0 0
    %1573 = vmatpush1.bf16.msra.mxu0 %v1436
    %1574 = vmatprep.subr.bf16.mxu0 0
    %1575 = vmatpush1.bf16.msra.mxu0 %v1435
    %1576 = vmatprep.subr.bf16.mxu0 0
    %1577 = vmatpush1.bf16.msra.mxu0 %v1434
    %1578 = vmatprep.subr.bf16.mxu0 0
    %1579 = vmatpush2.bf16.msra.mxu0 %v1449
    %1580 = vmatprep.subr.bf16.mxu0 0
    %1581 = vmatpush2.bf16.msra.mxu0 %v1448
    %1582 = vmatprep.subr.bf16.mxu0 0
    %1583 = vmatpush2.bf16.msra.mxu0 %v1447
    %1584 = vmatprep.subr.bf16.mxu0 0
    %1585 = vmatpush2.bf16.msra.mxu0 %v1446
    %1586 = vmatprep.subr.bf16.mxu0 0
    %1587 = vmatpush2.bf16.msra.mxu0 %v1445
    %1588 = vmatprep.subr.bf16.mxu0 0
    %1589 = vmatpush2.bf16.msra.mxu0 %v1444
    %1590 = vmatprep.subr.bf16.mxu0 0
    %1591 = vmatpush2.bf16.msra.mxu0 %v1443
    %1592 = vmatprep.subr.bf16.mxu0 0
    %1593 = vmatpush2.bf16.msra.mxu0 %v1442
    %1594 = vmatprep.mubr.bf16.mxu0 %v1036
    %1595 = vmatmul.mubr.bf16.gmra.mxu0 %v1035
    %v1596 = vpop.f32.mrf.mxu0
    %v1597 = vadd.f32 %v1176, %v1596
    %v1598 = vpop.f32.mrf.mxu0
    %v1599 = vpop.f32.mrf.mxu0
    %v1600 = vpop.f32.mrf.mxu0
    %1601 = vdwg.mxu0
    %1602 = vmatprep.subr.bf16.mxu0 0
    %1603 = vmatpush1.bf16.msra.mxu0 %v1457
    %1604 = vmatprep.subr.bf16.mxu0 0
    %1605 = vmatpush1.bf16.msra.mxu0 %v1456
    %1606 = vmatprep.subr.bf16.mxu0 0
    %1607 = vmatpush1.bf16.msra.mxu0 %v1455
    %1608 = vmatprep.subr.bf16.mxu0 0
    %1609 = vmatpush1.bf16.msra.mxu0 %v1454
    %1610 = vmatprep.subr.bf16.mxu0 0
    %1611 = vmatpush1.bf16.msra.mxu0 %v1453
    %1612 = vmatprep.subr.bf16.mxu0 0
    %1613 = vmatpush1.bf16.msra.mxu0 %v1452
    %1614 = vmatprep.subr.bf16.mxu0 0
    %1615 = vmatpush1.bf16.msra.mxu0 %v1451
    %1616 = vmatprep.subr.bf16.mxu0 0
    %1617 = vmatpush1.bf16.msra.mxu0 %v1450
    %1618 = vmatprep.subr.bf16.mxu0 0
    %1619 = vmatpush2.bf16.msra.mxu0 %v1465
    %1620 = vmatprep.subr.bf16.mxu0 0
    %1621 = vmatpush2.bf16.msra.mxu0 %v1464
    %1622 = vmatprep.subr.bf16.mxu0 0
    %1623 = vmatpush2.bf16.msra.mxu0 %v1463
    %1624 = vmatprep.subr.bf16.mxu0 0
    %1625 = vmatpush2.bf16.msra.mxu0 %v1462
    %1626 = vmatprep.subr.bf16.mxu0 0
    %1627 = vmatpush2.bf16.msra.mxu0 %v1461
    %1628 = vmatprep.subr.bf16.mxu0 0
    %1629 = vmatpush2.bf16.msra.mxu0 %v1460
    %1630 = vmatprep.subr.bf16.mxu0 0
    %1631 = vmatpush2.bf16.msra.mxu0 %v1459
    %1632 = vmatprep.subr.bf16.mxu0 0
    %1633 = vmatpush2.bf16.msra.mxu0 %v1458
    %1634 = vmatprep.mubr.bf16.mxu0 %v1038
    %1635 = vmatmul.mubr.bf16.gmra.mxu0 %v1037
    %v1636 = vpop.f32.mrf.mxu0
    %v1637 = vadd.f32 %v1597, %v1636
    %v1638 = vpop.f32.mrf.mxu0
    %v1639 = vpop.f32.mrf.mxu0
    %v1640 = vpop.f32.mrf.mxu0
    %1641 = vdwg.mxu0
    %1642 = vmatprep.subr.bf16.mxu0 0
    %1643 = vmatpush1.bf16.msra.mxu0 %v1473
    %1644 = vmatprep.subr.bf16.mxu0 0
    %1645 = vmatpush1.bf16.msra.mxu0 %v1472
    %1646 = vmatprep.subr.bf16.mxu0 0
    %1647 = vmatpush1.bf16.msra.mxu0 %v1471
    %1648 = vmatprep.subr.bf16.mxu0 0
    %1649 = vmatpush1.bf16.msra.mxu0 %v1470
    %1650 = vmatprep.subr.bf16.mxu0 0
    %1651 = vmatpush1.bf16.msra.mxu0 %v1469
    %1652 = vmatprep.subr.bf16.mxu0 0
    %1653 = vmatpush1.bf16.msra.mxu0 %v1468
    %1654 = vmatprep.subr.bf16.mxu0 0
    %1655 = vmatpush1.bf16.msra.mxu0 %v1467
    %1656 = vmatprep.subr.bf16.mxu0 0
    %1657 = vmatpush1.bf16.msra.mxu0 %v1466
    %1658 = vmatprep.subr.bf16.mxu0 0
    %1659 = vmatpush2.bf16.msra.mxu0 %v1481
    %1660 = vmatprep.subr.bf16.mxu0 0
    %1661 = vmatpush2.bf16.msra.mxu0 %v1480
    %1662 = vmatprep.subr.bf16.mxu0 0
    %1663 = vmatpush2.bf16.msra.mxu0 %v1479
    %1664 = vmatprep.subr.bf16.mxu0 0
    %1665 = vmatpush2.bf16.msra.mxu0 %v1478
    %1666 = vmatprep.subr.bf16.mxu0 0
    %1667 = vmatpush2.bf16.msra.mxu0 %v1477
    %1668 = vmatprep.subr.bf16.mxu0 0
    %1669 = vmatpush2.bf16.msra.mxu0 %v1476
    %1670 = vmatprep.subr.bf16.mxu0 0
    %1671 = vmatpush2.bf16.msra.mxu0 %v1475
    %1672 = vmatprep.subr.bf16.mxu0 0
    %1673 = vmatpush2.bf16.msra.mxu0 %v1474
    %1674 = vmatprep.mubr.bf16.mxu0 %v1040
    %1675 = vmatmul.mubr.bf16.gmra.mxu0 %v1039
    %v1676 = vpop.f32.mrf.mxu0
    %v1677 = vadd.f32 %v1637, %v1676
    %v1678 = vpop.f32.mrf.mxu0
    %v1679 = vpop.f32.mrf.mxu0
    %v1680 = vpop.f32.mrf.mxu0
    %1681 = vdwg.mxu0
    %1682 = vmatprep.subr.bf16.mxu0 0
    %1683 = vmatpush1.bf16.msra.mxu0 %v1489
    %1684 = vmatprep.subr.bf16.mxu0 0
    %1685 = vmatpush1.bf16.msra.mxu0 %v1488
    %1686 = vmatprep.subr.bf16.mxu0 0
    %1687 = vmatpush1.bf16.msra.mxu0 %v1487
    %1688 = vmatprep.subr.bf16.mxu0 0
    %1689 = vmatpush1.bf16.msra.mxu0 %v1486
    %1690 = vmatprep.subr.bf16.mxu0 0
    %1691 = vmatpush1.bf16.msra.mxu0 %v1485
    %1692 = vmatprep.subr.bf16.mxu0 0
    %1693 = vmatpush1.bf16.msra.mxu0 %v1484
    %1694 = vmatprep.subr.bf16.mxu0 0
    %1695 = vmatpush1.bf16.msra.mxu0 %v1483
    %1696 = vmatprep.subr.bf16.mxu0 0
    %1697 = vmatpush1.bf16.msra.mxu0 %v1482
    %1698 = vmatprep.subr.bf16.mxu0 0
    %1699 = vmatpush2.bf16.msra.mxu0 %v1497
    %1700 = vmatprep.subr.bf16.mxu0 0
    %1701 = vmatpush2.bf16.msra.mxu0 %v1496
    %1702 = vmatprep.subr.bf16.mxu0 0
    %1703 = vmatpush2.bf16.msra.mxu0 %v1495
    %1704 = vmatprep.subr.bf16.mxu0 0
    %1705 = vmatpush2.bf16.msra.mxu0 %v1494
    %1706 = vmatprep.subr.bf16.mxu0 0
    %1707 = vmatpush2.bf16.msra.mxu0 %v1493
    %1708 = vmatprep.subr.bf16.mxu0 0
    %1709 = vmatpush2.bf16.msra.mxu0 %v1492
    %1710 = vmatprep.subr.bf16.mxu0 0
    %1711 = vmatpush2.bf16.msra.mxu0 %v1491
    %1712 = vmatprep.subr.bf16.mxu0 0
    %1713 = vmatpush2.bf16.msra.mxu0 %v1490
    %1714 = vmatprep.mubr.bf16.mxu0 %v1042
    %1715 = vmatmul.mubr.bf16.gmra.mxu0 %v1041
    %v1716 = vpop.f32.mrf.mxu0
    %v1717 = vadd.f32 %v1677, %v1716
    %v1718 = vpop.f32.mrf.mxu0
    %v1719 = vpop.f32.mrf.mxu0
    %v1720 = vpop.f32.mrf.mxu0
    %1721 = vdwg.mxu0
    %v1722 = vmax.f32 %v1717, 0.0
    %1723 = vst [vmem:[%s5] sm:$0xff] %v1722
    // Predicated region
    $region30: #{mlp_forward.1} parent=1 // pred_check
      _
    $region31: #{mlp_forward.1} parent=1 // pred_check_branch
      %1725 = sbr.rel (0) target = $region33
    $region32: #{mlp_forward.1} parent=1 // pred_region
      _
    $region33: #{mlp_forward.1} parent=1 // pred_fallthru
      _
    // Predicated region
    $region34: #{mlp_forward.1} parent=1 // pred_check
      _
    $region35: #{mlp_forward.1} parent=1 // pred_check_branch
      %1727 = sbr.rel (0) target = $region37
    $region36: #{mlp_forward.1} parent=1 // pred_region
      _
    $region37: #{mlp_forward.1} parent=1 // pred_fallthru
      _
    %1728 = vsyncpa [#allocation3], 1
    %1729 = vsyncpa [#allocation5], 1

</llo_original>
